<compile_context>
chip_gen: v7x
topology: tpu7x:2x2x1
jax: 0.10.0
libtpu: 0.0.40
codegen_flags: <defaults>
</compile_context>

<pallas_src>
import jax
import jax.numpy as jnp
from jax.experimental import pallas as pl
from jax.experimental.pallas import tpu as pltpu


def sentiment_kernel(xt_ref, w1t_ref, b1_ref, w2_ref, b2_ref, o_ref):
    # fc1 on the MXU: (H, D_in) @ (D_in, TILE_B) -> (H, TILE_B), f32 accumulate.
    h = jnp.dot(w1t_ref[...], xt_ref[...], preferred_element_type=jnp.float32)
    # Bias + ReLU on the VPU (f32 epilogue; b1 is an (H, 1) column, broadcast over lanes).
    h = jnp.maximum(h + b1_ref[...], 0.0)
    # fc2 (output_dim == 1): VPU multiply + XLU sublane reduce instead of an
    # N=1 MXU matmul.  Result is lane-dense: (1, TILE_B).
    y = jnp.sum(h * w2_ref[...], axis=0, keepdims=True)
    y = y + b2_ref[0, 0]                       # scalar bias from SMEM
    # Sigmoid: exp goes to the EUP slot, free relative to the MXU/VPU work.
    o_ref[...] = jax.nn.sigmoid(y).astype(o_ref.dtype)


def sentiment_net(x, w1, b1, w2, b2, *, tile_b=128):
    """Forward pass of SentimentNet.

    x: (B, D_in) f32; w1: (D_in, H); b1: (1, H); w2: (H, 1); b2: (1, 1).
    Returns (B, 1) f32 probabilities.
    """
    B, d_in = x.shape
    H = w1.shape[1]
    assert w2.shape == (H, 1), "kernel specializes fc2 to output_dim == 1"

    # Batch tiling: full-array block for tiny B (block == full dim is always
    # legal), otherwise lane-aligned 128-row tiles over a zero-padded batch
    # (padding sliced off after the call).
    if B <= tile_b:
        tile_b = B
    bp = pl.cdiv(B, tile_b) * tile_b
    if bp != B:
        x = jnp.pad(x, ((0, bp - B), (0, 0)))

    # Layout plumbing done once, outside the kernel (fuses with the bf16 cast):
    # batch on lanes, bf16 matmul operands, f32 biases / f32 epilogue.
    xt = x.T.astype(jnp.bfloat16)                 # (D_in, Bp)
    w1t = w1.T.astype(jnp.bfloat16)               # (H, D_in)
    b1c = b1.reshape(H, 1).astype(jnp.float32)    # (H, 1) column
    w2c = w2.reshape(H, 1).astype(jnp.float32)    # (H, 1) column
    b2c = b2.reshape(1, 1).astype(jnp.float32)    # (1, 1) scalar

    out = pl.pallas_call(
        sentiment_kernel,
        out_shape=jax.ShapeDtypeStruct((1, bp), jnp.float32),
        grid=(bp // tile_b,),
        in_specs=[
            pl.BlockSpec((d_in, tile_b), lambda i: (0, i)),   # x^T batch tile (pipelined)
            pl.BlockSpec((H, d_in), lambda i: (0, 0)),        # W1^T, VMEM-resident
            pl.BlockSpec((H, 1), lambda i: (0, 0)),           # b1 column
            pl.BlockSpec((H, 1), lambda i: (0, 0)),           # w2 column
            pl.BlockSpec((1, 1), lambda i: (0, 0),
                         memory_space=pltpu.SMEM),            # b2 scalar in SMEM
        ],
        out_specs=pl.BlockSpec((1, tile_b), lambda i: (0, i)),  # lane-dense output
        compiler_params=pltpu.CompilerParams(
            dimension_semantics=("parallel",)),                 # megacore split on v7x
    )(xt, w1t, b1c, w2c, b2c)

    return out[0, :B].reshape(B, 1)


def init_params(key, input_dim, hidden_dim, output_dim):
    # Deterministic init mirroring nn.Linear's U(-1/sqrt(fan_in), 1/sqrt(fan_in)).
    k1, k2, k3, k4 = jax.random.split(key, 4)
    bound1 = 1.0 / (input_dim ** 0.5)
    bound2 = 1.0 / (hidden_dim ** 0.5)
    w1 = jax.random.uniform(k1, (input_dim, hidden_dim), jnp.float32, -bound1, bound1)
    b1 = jax.random.uniform(k2, (1, hidden_dim), jnp.float32, -bound1, bound1)
    w2 = jax.random.uniform(k3, (hidden_dim, output_dim), jnp.float32, -bound2, bound2)
    b2 = jax.random.uniform(k4, (1, output_dim), jnp.float32, -bound2, bound2)
    return w1, b1, w2, b2


if __name__ == "__main__":
    batch = 256          # 2 grid steps of 128 rows -> exercises pipelining / megacore
    input_dim = 32
    hidden_dim = 128
    output_dim = 1

    key = jax.random.PRNGKey(0)
    kx, kp = jax.random.split(key)
    x = jax.random.normal(kx, (batch, input_dim), jnp.float32)
    w1, b1, w2, b2 = init_params(kp, input_dim, hidden_dim, output_dim)

    out = jax.block_until_ready(sentiment_net(x, w1, b1, w2, b2))

    # Reference in plain JAX, matching the kernel's bf16 fc1 operands / f32 accumulation.
    h_ref = jnp.maximum(
        jnp.dot(x.astype(jnp.bfloat16), w1.astype(jnp.bfloat16),
                preferred_element_type=jnp.float32) + b1, 0.0)
    ref = jax.nn.sigmoid(h_ref @ w2 + b2)

    assert out.shape == (batch, output_dim)
    assert bool(jnp.all(jnp.isfinite(out)))
    assert jnp.allclose(out, ref, atol=1e-4, rtol=1e-4)

    print("KERNEL_OK")
</pallas_src>

<mosaic_0001>
module attributes {stable_mosaic.version = 11 : i64} {
  func.func @sentiment_kernel(%arg0: i32, %arg1: memref<32x128xbf16, #tpu.memory_space<vmem>>, %arg2: memref<128x32xbf16, #tpu.memory_space<vmem>>, %arg3: memref<128x1xf32, #tpu.memory_space<vmem>>, %arg4: memref<128x1xf32, #tpu.memory_space<vmem>>, %arg5: memref<1x1xf32, #tpu.memory_space<smem>>, %arg6: memref<1x128xf32, #tpu.memory_space<vmem>>) attributes {dimension_semantics = [#tpu.dimension_semantics<parallel>], iteration_bounds = array<i64: 2>, scalar_prefetch = 0 : i64, scratch_operands = 0 : i64, tpu.core_type = #tpu.core_type<tc>, window_params = [{transform_indices = @transform_0, window_bounds = array<i64: 32, 128>}, {pipeline_mode = #tpu.pipeline_mode<synchronous>, transform_indices = @transform_1, window_bounds = array<i64: 128, 32>}, {pipeline_mode = #tpu.pipeline_mode<synchronous>, transform_indices = @transform_2, window_bounds = array<i64: 128, 1>}, {pipeline_mode = #tpu.pipeline_mode<synchronous>, transform_indices = @transform_3, window_bounds = array<i64: 128, 1>}, {transform_indices = @transform_4, window_bounds = array<i64: 1, 1>}, {transform_indices = @transform_5, window_bounds = array<i64: 1, 128>}]} {
    %c0 = arith.constant 0 : index
    %c0_0 = arith.constant 0 : index
    %0 = vector.load %arg2[%c0, %c0_0] : memref<128x32xbf16, #tpu.memory_space<vmem>>, vector<128x32xbf16>
    %c0_1 = arith.constant 0 : index
    %c0_2 = arith.constant 0 : index
    %1 = vector.load %arg1[%c0_1, %c0_2] : memref<32x128xbf16, #tpu.memory_space<vmem>>, vector<32x128xbf16>
    %cst = arith.constant dense<0.000000e+00> : vector<128x128xf32>
    %2 = tpu.matmul %0, %1, %cst {dimension_numbers = #tpu.dot_dimension_numbers<[1], [0], [0], [1], [0, 0, 1, 1], [], []>} : vector<128x32xbf16>, vector<32x128xbf16>, vector<128x128xf32> -> vector<128x128xf32>
    %c0_3 = arith.constant 0 : index
    %c0_4 = arith.constant 0 : index
    %3 = vector.load %arg3[%c0_3, %c0_4] : memref<128x1xf32, #tpu.memory_space<vmem>>, vector<128x1xf32>
    %4 = vector.broadcast %3 : vector<128x1xf32> to vector<128x128xf32>
    %5 = arith.addf %2, %4 : vector<128x128xf32>
    %cst_5 = arith.constant 0.000000e+00 : f32
    %6 = vector.broadcast %cst_5 : f32 to vector<128x128xf32>
    %7 = arith.maximumf %5, %6 : vector<128x128xf32>
    %c0_6 = arith.constant 0 : index
    %c0_7 = arith.constant 0 : index
    %8 = vector.load %arg4[%c0_6, %c0_7] : memref<128x1xf32, #tpu.memory_space<vmem>>, vector<128x1xf32>
    %9 = vector.broadcast %8 : vector<128x1xf32> to vector<128x128xf32>
    %10 = arith.mulf %7, %9 : vector<128x128xf32>
    %cst_8 = arith.constant dense<0.000000e+00> : vector<128xf32>
    %11 = vector.multi_reduction <add>, %10, %cst_8 [0] : vector<128x128xf32> to vector<128xf32>
    %12 = vector.shape_cast %11 : vector<128xf32> to vector<1x128xf32>
    %c0_9 = arith.constant 0 : index
    %c0_10 = arith.constant 0 : index
    %13 = memref.load %arg5[%c0_9, %c0_10] : memref<1x1xf32, #tpu.memory_space<smem>>
    %14 = vector.broadcast %13 : f32 to vector<1x128xf32>
    %15 = arith.addf %12, %14 : vector<1x128xf32>
    %16 = arith.negf %15 : vector<1x128xf32>
    %17 = math.exp %16 : vector<1x128xf32>
    %cst_11 = arith.constant 1.000000e+00 : f32
    %18 = vector.broadcast %cst_11 : f32 to vector<1x128xf32>
    %19 = arith.addf %18, %17 : vector<1x128xf32>
    %20 = arith.divf %18, %19 : vector<1x128xf32>
    %c0_12 = arith.constant 0 : index
    %c0_13 = arith.constant 0 : index
    %21 = vector.load %arg6[%c0_12, %c0_13] : memref<1x128xf32, #tpu.memory_space<vmem>>, vector<1x128xf32>
    tpu.vector_store %arg6[%c0_12, %c0_13], %20 {strides = array<i32>} : memref<1x128xf32, #tpu.memory_space<vmem>>, vector<1x128xf32>,
    return
  }
  func.func @transform_0(%arg0: i32) -> (i32, i32) {
    %c0_i32 = arith.constant 0 : i32
    %c0_i32_0 = arith.constant 0 : i32
    return %c0_i32, %arg0 : i32, i32
  }
  func.func @transform_1(%arg0: i32) -> (i32, i32) {
    %c0_i32 = arith.constant 0 : i32
    %c0_i32_0 = arith.constant 0 : i32
    %c0_i32_1 = arith.constant 0 : i32
    return %c0_i32, %c0_i32_0 : i32, i32
  }
  func.func @transform_2(%arg0: i32) -> (i32, i32) {
    %c0_i32 = arith.constant 0 : i32
    %c0_i32_0 = arith.constant 0 : i32
    %c0_i32_1 = arith.constant 0 : i32
    return %c0_i32, %c0_i32_0 : i32, i32
  }
  func.func @transform_3(%arg0: i32) -> (i32, i32) {
    %c0_i32 = arith.constant 0 : i32
    %c0_i32_0 = arith.constant 0 : i32
    %c0_i32_1 = arith.constant 0 : i32
    return %c0_i32, %c0_i32_0 : i32, i32
  }
  func.func @transform_4(%arg0: i32) -> (i32, i32) {
    %c0_i32 = arith.constant 0 : i32
    %c0_i32_0 = arith.constant 0 : i32
    %c0_i32_1 = arith.constant 0 : i32
    return %c0_i32, %c0_i32_0 : i32, i32
  }
  func.func @transform_5(%arg0: i32) -> (i32, i32) {
    %c0_i32 = arith.constant 0 : i32
    %c0_i32_0 = arith.constant 0 : i32
    return %c0_i32, %arg0 : i32, i32
  }
}

</mosaic_0001>

<llo_original>
// kernel: tpu_custom_call.1
$region0: #{tpu_custom_call.1}
  #allocation0 [shape = 'u32[]', space=smem, size = 0x4, offset = 0x4, fixed_abs, tag = 'smem constant byte address 0x4 - core index']
  #allocation1 [shape = 'u32[144,128]{1,0:T(1,128)}', space=vmem, size = 0x12000, scoped, tag = 'internal scratch']
  #allocation2 [shape = 'f32[1,1]{1,0:T(1,128)S(6)}', space=smem, size = 0x200, scoped, tag = 'scoped memory for tpu_custom_call.1']
  %s0 = inlined_call_operand.vmem [shape: bf16[32,256], index: 0, kind: input, shape index: {}]
  %s1 = inlined_call_operand.vmem [shape: bf16[128,32], index: 1, kind: input, shape index: {}]
  %s2 = inlined_call_operand.vmem [shape: f32[128,1], index: 2, kind: input, shape index: {}]
  %s3 = inlined_call_operand.vmem [shape: f32[128,1], index: 3, kind: input, shape index: {}]
  %s4 = inlined_call_operand.<no memory space> [shape: f32[1,1], index: 4, kind: input, shape index: {}]
  %s5 = inlined_call_operand.hbm [shape: f32[1,256], index: 5, kind: output, shape index: {}]
  %s6 = sld [smem:[#allocation0]]
  $region94: #{tpu_custom_call.1} parent=0
    _
  %s8 = ssub.s32 1, %s6
  %s9 = scalar_select 0, %s8, %s6
  %10 = sst [smem:[#allocation2]] %s4
  $region1: #{tpu_custom_call.1} parent=0
    #allocation3 [shape = 'u8[16384]{0}', space=vmem, size = 0x4000, scoped, tag = 'input window, operand 0']
    #allocation4 [shape = 'u8[1024]{0}', space=vmem, size = 0x400, scoped, tag = 'output window, operand 0']
    #allocation5 [shape = 's32[2]{0}', space=sflag, size = 0x8, scoped, tag = 'scoped memory for tpu_custom_call.1']
    %11 = vsyncpa [#allocation5], 0
    %s12 = scalar_lea.sflag [#allocation5], 1
    %13 = vsyncpa %s12, 0
    loop: start=0, step=1, limit=4
    $region2: #{tpu_custom_call.1} parent=1 // loop_pre_header
      _
    $region3: #{tpu_custom_call.1} parent=1 // loop_header
      %s15 = sphi 0, %s19
      %p16 = scmp.ge.s32.totalorder %s15, 4
      %s25 = sphi 0, %s27
      %s28 = sphi 0, %s25
      %s29 = sphi 0, %s28
      %s45 = sphi 0, %s29
      %s49 = sphi 0, %s49
      %s51 = sphi 0, %s49
      %s52 = sphi 0, %s51
      %s66 = sphi 0, %s52
      %s70 = sphi 0, %s70
      %s72 = sphi 0, %s70
      %s73 = sphi 0, %s72
      %s87 = sphi 0, %s73
      %s91 = sphi 0, %s91
      %s93 = sphi 0, %s91
      %s94 = sphi 0, %s93
      %s108 = sphi 0, %s94
      %s112 = sphi 0, %s112
      %s114 = sphi 0, %s112
      %s115 = sphi 0, %s114
      %s129 = sphi 0, %s115
      %s135 = sphi 0, %s137
      %s138 = sphi 0, %s135
      %s139 = sphi 0, %s138
      %s155 = sphi 0, %s139
    $region4: #{tpu_custom_call.1} parent=1 // loop_header_branch
      %18 = sbr.rel (%p16) target = $region8
    $region5: #{tpu_custom_call.1} parent=1 // loop_body
      %s20 = ssub.s32 %s15, 1
      %s21 = ssub.s32 %s15, 2
      %s22 = sadd.s32 %s15, 1
      %s23 = ssub.s32 %s15, %s22
      %p24 = scmp.eq.s32.totalorder %s23, 0
      %s26 = sadd.s32 %s25, 1
      %s27 = scalar_select %p24, %s25, %s26
      %p30 = pneg %p24
      %p31 = scmp.eq.s32.totalorder %s15, 1
      %p32 = por %p30, %p31
      %p33 = scmp.ne.s32.totalorder %s25, %s28
      %p34 = scmp.eq.s32.totalorder %s15, 0
      %p35 = por %p33, %p34
      %p36 = scmp.ne.s32.totalorder %s25, %s28
      %p37 = scmp.eq.s32.totalorder %s20, 1
      %p38 = por %p36, %p37
      %p39 = scmp.ne.s32.totalorder %s28, %s29
      %p40 = scmp.eq.s32.totalorder %s20, 0
      %p41 = por %p39, %p40
      %p42 = scmp.ne.s32.totalorder %s28, %s29
      %p43 = scmp.eq.s32.totalorder %s21, 1
      %p44 = por %p42, %p43
      %p46 = scmp.ne.s32.totalorder %s29, %s45
      %p47 = scmp.eq.s32.totalorder %s21, 0
      %p48 = por %p46, %p47
      %s50 = sadd.s32 %s49, 1
      %p53 = scmp.eq.s32.totalorder %s15, 1
      %p54 = scmp.ne.s32.totalorder %s49, %s51
      %p55 = scmp.eq.s32.totalorder %s15, 0
      %p56 = por %p54, %p55
      %p57 = scmp.ne.s32.totalorder %s49, %s51
      %p58 = scmp.eq.s32.totalorder %s20, 1
      %p59 = por %p57, %p58
      %p60 = scmp.ne.s32.totalorder %s51, %s52
      %p61 = scmp.eq.s32.totalorder %s20, 0
      %p62 = por %p60, %p61
      %p63 = scmp.ne.s32.totalorder %s51, %s52
      %p64 = scmp.eq.s32.totalorder %s21, 1
      %p65 = por %p63, %p64
      %p67 = scmp.ne.s32.totalorder %s52, %s66
      %p68 = scmp.eq.s32.totalorder %s21, 0
      %p69 = por %p67, %p68
      %s71 = sadd.s32 %s70, 1
      %p74 = scmp.eq.s32.totalorder %s15, 1
      %p75 = scmp.ne.s32.totalorder %s70, %s72
      %p76 = scmp.eq.s32.totalorder %s15, 0
      %p77 = por %p75, %p76
      %p78 = scmp.ne.s32.totalorder %s70, %s72
      %p79 = scmp.eq.s32.totalorder %s20, 1
      %p80 = por %p78, %p79
      %p81 = scmp.ne.s32.totalorder %s72, %s73
      %p82 = scmp.eq.s32.totalorder %s20, 0
      %p83 = por %p81, %p82
      %p84 = scmp.ne.s32.totalorder %s72, %s73
      %p85 = scmp.eq.s32.totalorder %s21, 1
      %p86 = por %p84, %p85
      %p88 = scmp.ne.s32.totalorder %s73, %s87
      %p89 = scmp.eq.s32.totalorder %s21, 0
      %p90 = por %p88, %p89
      %s92 = sadd.s32 %s91, 1
      %p95 = scmp.eq.s32.totalorder %s15, 1
      %p96 = scmp.ne.s32.totalorder %s91, %s93
      %p97 = scmp.eq.s32.totalorder %s15, 0
      %p98 = por %p96, %p97
      %p99 = scmp.ne.s32.totalorder %s91, %s93
      %p100 = scmp.eq.s32.totalorder %s20, 1
      %p101 = por %p99, %p100
      %p102 = scmp.ne.s32.totalorder %s93, %s94
      %p103 = scmp.eq.s32.totalorder %s20, 0
      %p104 = por %p102, %p103
      %p105 = scmp.ne.s32.totalorder %s93, %s94
      %p106 = scmp.eq.s32.totalorder %s21, 1
      %p107 = por %p105, %p106
      %p109 = scmp.ne.s32.totalorder %s94, %s108
      %p110 = scmp.eq.s32.totalorder %s21, 0
      %p111 = por %p109, %p110
      %s113 = sadd.s32 %s112, 1
      %p116 = scmp.eq.s32.totalorder %s15, 1
      %p117 = scmp.ne.s32.totalorder %s112, %s114
      %p118 = scmp.eq.s32.totalorder %s15, 0
      %p119 = por %p117, %p118
      %p120 = scmp.ne.s32.totalorder %s112, %s114
      %p121 = scmp.eq.s32.totalorder %s20, 1
      %p122 = por %p120, %p121
      %p123 = scmp.ne.s32.totalorder %s114, %s115
      %p124 = scmp.eq.s32.totalorder %s20, 0
      %p125 = por %p123, %p124
      %p126 = scmp.ne.s32.totalorder %s114, %s115
      %p127 = scmp.eq.s32.totalorder %s21, 1
      %p128 = por %p126, %p127
      %p130 = scmp.ne.s32.totalorder %s115, %s129
      %p131 = scmp.eq.s32.totalorder %s21, 0
      %p132 = por %p130, %p131
      %s133 = ssub.s32 %s15, %s22
      %p134 = scmp.eq.s32.totalorder %s133, 0
      %s136 = sadd.s32 %s135, 1
      %s137 = scalar_select %p134, %s135, %s136
      %p140 = pneg %p134
      %p141 = scmp.eq.s32.totalorder %s15, 1
      %p142 = por %p140, %p141
      %p143 = scmp.ne.s32.totalorder %s135, %s138
      %p144 = scmp.eq.s32.totalorder %s15, 0
      %p145 = por %p143, %p144
      %p146 = scmp.ne.s32.totalorder %s135, %s138
      %p147 = scmp.eq.s32.totalorder %s20, 1
      %p148 = por %p146, %p147
      %p149 = scmp.ne.s32.totalorder %s138, %s139
      %p150 = scmp.eq.s32.totalorder %s20, 0
      %p151 = por %p149, %p150
      %p152 = scmp.ne.s32.totalorder %s138, %s139
      %p153 = scmp.eq.s32.totalorder %s21, 1
      %p154 = por %p152, %p153
      %p156 = scmp.ne.s32.totalorder %s139, %s155
      %p157 = scmp.eq.s32.totalorder %s21, 0
      %p158 = por %p156, %p157
      %p159 = scmp.le.s32.totalorder 1, %s15
      %p160 = scmp.lt.s32.totalorder %s15, 3
      %p161 = pnand %p159, %p160
      %p162 = pneg %p161
      // Predicated region
      $region9: #{tpu_custom_call.1} parent=5 // pred_check
        _
      $region10: #{tpu_custom_call.1} parent=5 // pred_check_branch
        %164 = sbr.rel (%p161) target = $region12
      $region11: #{tpu_custom_call.1} parent=5 // pred_region
        %s165 = ssub.s32 %s15, 1
        // Predicated region
        $region13: #{tpu_custom_call.1} parent=11 // pred_check
          %p166 = pneg %p62
        $region14: #{tpu_custom_call.1} parent=11 // pred_check_branch
          %168 = sbr.rel (%p166) target = $region16
        $region15: #{tpu_custom_call.1} parent=11 // pred_region
          _
        $region16: #{tpu_custom_call.1} parent=11 // pred_fallthru
          _
        // Predicated region
        $region17: #{tpu_custom_call.1} parent=11 // pred_check
          %p169 = pneg %p83
        $region18: #{tpu_custom_call.1} parent=11 // pred_check_branch
          %171 = sbr.rel (%p169) target = $region20
        $region19: #{tpu_custom_call.1} parent=11 // pred_region
          _
        $region20: #{tpu_custom_call.1} parent=11 // pred_fallthru
          _
        // Predicated region
        $region21: #{tpu_custom_call.1} parent=11 // pred_check
          %p172 = pneg %p104
        $region22: #{tpu_custom_call.1} parent=11 // pred_check_branch
          %174 = sbr.rel (%p172) target = $region24
        $region23: #{tpu_custom_call.1} parent=11 // pred_region
          _
        $region24: #{tpu_custom_call.1} parent=11 // pred_fallthru
          _
        // Predicated region
        $region25: #{tpu_custom_call.1} parent=11 // pred_check
          %p175 = pneg %p125
        $region26: #{tpu_custom_call.1} parent=11 // pred_check_branch
          %177 = sbr.rel (%p175) target = $region28
        $region27: #{tpu_custom_call.1} parent=11 // pred_region
          _
        $region28: #{tpu_custom_call.1} parent=11 // pred_fallthru
          _
      $region12: #{tpu_custom_call.1} parent=5 // pred_fallthru
        _
      %p178 = scmp.lt.s32.totalorder %s15, 2
      // Predicated region
      $region29: #{tpu_custom_call.1} parent=5 // pred_check
        %p179 = pneg %p178
      $region30: #{tpu_custom_call.1} parent=5 // pred_check_branch
        %181 = sbr.rel (%p179) target = $region32
      $region31: #{tpu_custom_call.1} parent=5 // pred_region
        // Predicated region
        $region33: #{tpu_custom_call.1} parent=31 // pred_check
          %p182 = pneg %p35
        $region34: #{tpu_custom_call.1} parent=31 // pred_check_branch
          %184 = sbr.rel (%p182) target = $region36
        $region35: #{tpu_custom_call.1} parent=31 // pred_region
          %s185 = sand.u32 %s25, 1
          %s186 = sand.u32 %s25, 1
          %s187 = smul.addr %s186, 16
          %s188 = scalar_lea.vmem [#allocation3], %s187
          %s189 = smul.addr %s15, 4
          %s190 = scalar_lea.vmem %s0, %s189
          // Predicated region
          $region37: #{tpu_custom_call.1} parent=35 // pred_check
            _
          $region38: #{tpu_custom_call.1} parent=35 // pred_check_branch
            %192 = sbr.rel (0) target = $region40
          $region39: #{tpu_custom_call.1} parent=35 // pred_region
            // Predicated region
            $region41: #{tpu_custom_call.1} parent=39 // pred_check
              _
            $region42: #{tpu_custom_call.1} parent=39 // pred_check_branch
              %194 = sbr.rel target = $region44
            $region43: #{tpu_custom_call.1} parent=39 // pred_region
              // Predicated region
              $region56: #{tpu_custom_call.1} parent=43 // pred_check
                _
              $region57: #{tpu_custom_call.1} parent=43 // pred_check_branch
                %215 = sbr.rel (0) target = $region59
              $region58: #{tpu_custom_call.1} parent=43 // pred_region
                loop: start=0, step=1, limit=1
                $region60: #{tpu_custom_call.1} parent=58 // loop_pre_header
                  _
                $region61: #{tpu_custom_call.1} parent=58 // loop_header
                  %s217 = sphi 0, %s221
                  %p218 = scmp.ge.s32.totalorder %s217, 1
                  %s222 = sphi %s190, %s190
                  %s223 = sphi %s188, %s188
                $region62: #{tpu_custom_call.1} parent=58 // loop_header_branch
                  %220 = sbr.rel (%p218) target = $region66
                $region63: #{tpu_custom_call.1} parent=58 // loop_body
                  _
                $region64: #{tpu_custom_call.1} parent=58 // loop_footer
                  %s221 = sadd.s32 1, %s217
                $region65: #{tpu_custom_call.1} parent=58 // loop_footer_branch
                  %216 = sbr.rel target = $region61
                $region66: #{tpu_custom_call.1} parent=58 // loop_exit
                  _
                loop: start=0, step=1, limit=1
                $region67: #{tpu_custom_call.1} parent=58 // loop_pre_header
                  _
                $region68: #{tpu_custom_call.1} parent=58 // loop_header
                  %s226 = sphi 0, %s230
                  %p227 = scmp.ge.s32.totalorder %s226, 1
                  %s231 = sphi %s190, %s190
                  %s232 = sphi %s188, %s188
                $region69: #{tpu_custom_call.1} parent=58 // loop_header_branch
                  %229 = sbr.rel (%p227) target = $region73
                $region70: #{tpu_custom_call.1} parent=58 // loop_body
                  %v233 = vld [vmem:[%s231] sm:$0xf]
                  %234 = vst [vmem:[%s232] sm:$0xf] %v233
                  %v235 = vld [vmem:[%s231 + $0x8] sm:$0xf]
                  %236 = vst [vmem:[%s232 + $0x4] sm:$0xf] %v235
                  %v237 = vld [vmem:[%s231 + $0x10] sm:$0xf]
                  %238 = vst [vmem:[%s232 + $0x8] sm:$0xf] %v237
                  %v239 = vld [vmem:[%s231 + $0x18] sm:$0xf]
                  %240 = vst [vmem:[%s232 + $0xc] sm:$0xf] %v239
                $region71: #{tpu_custom_call.1} parent=58 // loop_footer
                  %s230 = sadd.s32 1, %s226
                $region72: #{tpu_custom_call.1} parent=58 // loop_footer_branch
                  %225 = sbr.rel target = $region68
                $region73: #{tpu_custom_call.1} parent=58 // loop_exit
                  _
              $region59: #{tpu_custom_call.1} parent=43 // pred_fallthru
                _
            $region44: #{tpu_custom_call.1} parent=39 // pred_fallthru
              _
            // Predicated region
            $region45: #{tpu_custom_call.1} parent=39 // pred_check
              _
            $region46: #{tpu_custom_call.1} parent=39 // pred_check_branch
              %196 = sbr.rel (0) target = $region48
            $region47: #{tpu_custom_call.1} parent=39 // pred_region
              loop: start=0, step=1, limit=1
              $region49: #{tpu_custom_call.1} parent=47 // loop_pre_header
                _
              $region50: #{tpu_custom_call.1} parent=47 // loop_header
                %s199 = sphi 0, %s203
                %p200 = scmp.ge.s32.totalorder %s199, 1
                %s204 = sphi %s190, %s190
                %s205 = sphi %s188, %s188
              $region51: #{tpu_custom_call.1} parent=47 // loop_header_branch
                %202 = sbr.rel (%p200) target = $region55
              $region52: #{tpu_custom_call.1} parent=47 // loop_body
                %v206 = vld [vmem:[%s204] sm:$0xf]
                %207 = vst [vmem:[%s205] sm:$0xf] %v206
                %v208 = vld [vmem:[%s204 + $0x8] sm:$0xf]
                %209 = vst [vmem:[%s205 + $0x4] sm:$0xf] %v208
                %v210 = vld [vmem:[%s204 + $0x10] sm:$0xf]
                %211 = vst [vmem:[%s205 + $0x8] sm:$0xf] %v210
                %v212 = vld [vmem:[%s204 + $0x18] sm:$0xf]
                %213 = vst [vmem:[%s205 + $0xc] sm:$0xf] %v212
              $region53: #{tpu_custom_call.1} parent=47 // loop_footer
                %s203 = sadd.s32 1, %s199
              $region54: #{tpu_custom_call.1} parent=47 // loop_footer_branch
                %198 = sbr.rel target = $region50
              $region55: #{tpu_custom_call.1} parent=47 // loop_exit
                _
            $region48: #{tpu_custom_call.1} parent=39 // pred_fallthru
              _
          $region40: #{tpu_custom_call.1} parent=35 // pred_fallthru
            _
          %241 = vnop
        $region36: #{tpu_custom_call.1} parent=31 // pred_fallthru
          _
      $region32: #{tpu_custom_call.1} parent=5 // pred_fallthru
        _
      %p242 = scmp.le.s32.totalorder 1, %s15
      %p243 = scmp.lt.s32.totalorder %s15, 3
      %p244 = pnand %p242, %p243
      %p245 = pneg %p244
      // Predicated region
      $region74: #{tpu_custom_call.1} parent=5 // pred_check
        _
      $region75: #{tpu_custom_call.1} parent=5 // pred_check_branch
        %247 = sbr.rel (%p244) target = $region77
      $region76: #{tpu_custom_call.1} parent=5 // pred_region
        %s248 = ssub.s32 %s15, 1
        %s249 = sand.u32 %s28, 1
        %s250 = sand.u32 %s28, 1
        %s251 = smul.addr %s250, 16
        %s252 = scalar_lea.vmem [#allocation3], %s251
        // Predicated region
        $region78: #{tpu_custom_call.1} parent=76 // pred_check
          %p253 = pneg %p41
        $region79: #{tpu_custom_call.1} parent=76 // pred_check_branch
          %255 = sbr.rel (%p253) target = $region81
        $region80: #{tpu_custom_call.1} parent=76 // pred_region
          _
        $region81: #{tpu_custom_call.1} parent=76 // pred_fallthru
          _
        %s256 = sand.u32 %s28, 1
        %s257 = sand.u32 %s28, 1
        %s258 = smul.addr %s257, 16
        %s259 = scalar_lea.vmem [#allocation3], %s258
        %p260 = pneg %p41
        %p261 = pneg %p38
        %p262 = pneg %p62
        %p263 = pneg %p59
        %p264 = pneg %p83
        %p265 = pneg %p80
        %p266 = pneg %p104
        %p267 = pneg %p101
        %p268 = pneg %p125
        %p269 = pneg %p122
        %p270 = pneg %p151
        %p271 = pneg %p148
        %s272 = sand.u32 %s138, 1
        %s273 = scalar_lea.sflag [#allocation5], %s272
        %s274 = sand.u32 %s138, 1
        %s275 = scalar_lea.vmem [#allocation4], %s274
        %v277 = vld [vmem:[%s1] sm:$0xf]
        %v278 = vld [vmem:[%s1 + $0x4] sm:$0xf]
        %v279 = vld [vmem:[%s1 + $0x8] sm:$0xf]
        %v280 = vld [vmem:[%s1 + $0xc] sm:$0xf]
        %v281 = vld [vmem:[%s1 + $0x10] sm:$0xf]
        %v282 = vld [vmem:[%s1 + $0x14] sm:$0xf]
        %v283 = vld [vmem:[%s1 + $0x18] sm:$0xf]
        %v284 = vld [vmem:[%s1 + $0x1c] sm:$0xf]
        %v285 = vld [vmem:[%s1 + $0x20] sm:$0xf]
        %v286 = vld [vmem:[%s1 + $0x24] sm:$0xf]
        %v287 = vld [vmem:[%s1 + $0x28] sm:$0xf]
        %v288 = vld [vmem:[%s1 + $0x2c] sm:$0xf]
        %v289 = vld [vmem:[%s1 + $0x30] sm:$0xf]
        %v290 = vld [vmem:[%s1 + $0x34] sm:$0xf]
        %v291 = vld [vmem:[%s1 + $0x38] sm:$0xf]
        %v292 = vld [vmem:[%s1 + $0x3c] sm:$0xf]
        %v293 = vld [vmem:[%s252] sm:$0xf]
        %v294 = vld [vmem:[%s252 + $0x4] sm:$0xf]
        %v295 = vld [vmem:[%s252 + $0x8] sm:$0xf]
        %v296 = vld [vmem:[%s252 + $0xc] sm:$0xf]
        %v297 = vld [vmem:[%s2] sm:$0xff]
        %v298 = vld [vmem:[%s2 + $0x8] sm:$0xff]
        %v299 = vld [vmem:[%s2 + $0x10] sm:$0xff]
        %v300 = vld [vmem:[%s2 + $0x18] sm:$0xff]
        %v301 = vld [vmem:[%s2 + $0x20] sm:$0xff]
        %v302 = vld [vmem:[%s2 + $0x28] sm:$0xff]
        %v303 = vld [vmem:[%s2 + $0x30] sm:$0xff]
        %v304 = vld [vmem:[%s2 + $0x38] sm:$0xff]
        %v305 = vld [vmem:[%s2 + $0x40] sm:$0xff]
        %v306 = vld [vmem:[%s2 + $0x48] sm:$0xff]
        %v307 = vld [vmem:[%s2 + $0x50] sm:$0xff]
        %v308 = vld [vmem:[%s2 + $0x58] sm:$0xff]
        %v309 = vld [vmem:[%s2 + $0x60] sm:$0xff]
        %v310 = vld [vmem:[%s2 + $0x68] sm:$0xff]
        %v311 = vld [vmem:[%s2 + $0x70] sm:$0xff]
        %v312 = vld [vmem:[%s2 + $0x78] sm:$0xff]
        %314 = vset.pattern.permute.xlu0 0
        %315 = vperm.xlu0 %314, %v297
        %v316 = vpop.permute.xlu0 %315
        %319 = vset.pattern.permute.xlu0 0
        %320 = vperm.xlu0 %319, %v298
        %v321 = vpop.permute.xlu0 %320
        %324 = vset.pattern.permute.xlu0 0
        %325 = vperm.xlu0 %324, %v299
        %v326 = vpop.permute.xlu0 %325
        %329 = vset.pattern.permute.xlu0 0
        %330 = vperm.xlu0 %329, %v300
        %v331 = vpop.permute.xlu0 %330
        %334 = vset.pattern.permute.xlu0 0
        %335 = vperm.xlu0 %334, %v301
        %v336 = vpop.permute.xlu0 %335
        %339 = vset.pattern.permute.xlu0 0
        %340 = vperm.xlu0 %339, %v302
        %v341 = vpop.permute.xlu0 %340
        %344 = vset.pattern.permute.xlu0 0
        %345 = vperm.xlu0 %344, %v303
        %v346 = vpop.permute.xlu0 %345
        %349 = vset.pattern.permute.xlu0 0
        %350 = vperm.xlu0 %349, %v304
        %v351 = vpop.permute.xlu0 %350
        %354 = vset.pattern.permute.xlu0 0
        %355 = vperm.xlu0 %354, %v305
        %v356 = vpop.permute.xlu0 %355
        %359 = vset.pattern.permute.xlu0 0
        %360 = vperm.xlu0 %359, %v306
        %v361 = vpop.permute.xlu0 %360
        %364 = vset.pattern.permute.xlu0 0
        %365 = vperm.xlu0 %364, %v307
        %v366 = vpop.permute.xlu0 %365
        %369 = vset.pattern.permute.xlu0 0
        %370 = vperm.xlu0 %369, %v308
        %v371 = vpop.permute.xlu0 %370
        %374 = vset.pattern.permute.xlu0 0
        %375 = vperm.xlu0 %374, %v309
        %v376 = vpop.permute.xlu0 %375
        %379 = vset.pattern.permute.xlu0 0
        %380 = vperm.xlu0 %379, %v310
        %v381 = vpop.permute.xlu0 %380
        %384 = vset.pattern.permute.xlu0 0
        %385 = vperm.xlu0 %384, %v311
        %v386 = vpop.permute.xlu0 %385
        %389 = vset.pattern.permute.xlu0 0
        %390 = vperm.xlu0 %389, %v312
        %v391 = vpop.permute.xlu0 %390
        %v409 = vunpack.c.l.b16 %v277
        %v410 = vunpack.c.l.b16 %v278
        %v411 = vunpack.c.l.b16 %v279
        %v412 = vunpack.c.l.b16 %v280
        %v413 = vunpack.c.l.b16 %v281
        %v414 = vunpack.c.l.b16 %v282
        %v415 = vunpack.c.l.b16 %v283
        %v416 = vunpack.c.l.b16 %v284
        %v417 = vunpack.c.l.b16 %v285
        %v418 = vunpack.c.l.b16 %v286
        %v419 = vunpack.c.l.b16 %v287
        %v420 = vunpack.c.l.b16 %v288
        %v421 = vunpack.c.l.b16 %v289
        %v422 = vunpack.c.l.b16 %v290
        %v423 = vunpack.c.l.b16 %v291
        %v424 = vunpack.c.l.b16 %v292
        %v425 = vpack.c.b16 %v410, %v409
        %v426 = vpack.c.b16 %v412, %v411
        %v427 = vpack.c.b16 %v414, %v413
        %v428 = vpack.c.b16 %v416, %v415
        %v429 = vpack.c.b16 %v418, %v417
        %v430 = vpack.c.b16 %v420, %v419
        %v431 = vpack.c.b16 %v422, %v421
        %v432 = vpack.c.b16 %v424, %v423
        %v437 = vunpack.c.l.b16 %v293
        %v438 = vunpack.c.l.b16 %v294
        %v439 = vunpack.c.l.b16 %v295
        %v440 = vunpack.c.l.b16 %v296
        %v441 = vpack.c.b16 %v438, %v437
        %v442 = vpack.c.b16 %v440, %v439
        %vm445 = vcmask 261120
        %v447 = vsel %vm445, %v425, 0
        %v450 = vsel %vm445, %v426, 0
        %v453 = vsel %vm445, %v427, 0
        %v456 = vsel %vm445, %v428, 0
        %v459 = vsel %vm445, %v429, 0
        %v462 = vsel %vm445, %v430, 0
        %v465 = vsel %vm445, %v431, 0
        %v468 = vsel %vm445, %v432, 0
        %470 = vmatprep.subr.bf16.mxu0 0
        %471 = vmatpush1.bf16.msra.mxu0 %v441
        %472 = vmatprep.subr.bf16.mxu0 0
        %473 = vmatpush1.bf16.msra.mxu0 %v442
        %474 = vmatprep.subr.bf16.mxu0 0
        %475 = vmatpush1.bf16.msra.mxu0 0
        %476 = vmatprep.subr.bf16.mxu0 0
        %477 = vmatpush1.bf16.msra.mxu0 0
        %478 = vmatprep.subr.bf16.mxu0 0
        %479 = vmatpush1.bf16.msra.mxu0 0
        %480 = vmatprep.subr.bf16.mxu0 0
        %481 = vmatpush1.bf16.msra.mxu0 0
        %482 = vmatprep.subr.bf16.mxu0 0
        %483 = vmatpush1.bf16.msra.mxu0 0
        %484 = vmatprep.subr.bf16.mxu0 0
        %485 = vmatpush1.bf16.msra.mxu0 0
        %486 = vmatprep.subr.bf16.mxu0 0
        %487 = vmatpush1.bf16.msra.mxu0 0
        %488 = vmatprep.subr.bf16.mxu0 0
        %489 = vmatpush1.bf16.msra.mxu0 0
        %490 = vmatprep.subr.bf16.mxu0 0
        %491 = vmatpush1.bf16.msra.mxu0 0
        %492 = vmatprep.subr.bf16.mxu0 0
        %493 = vmatpush1.bf16.msra.mxu0 0
        %494 = vmatprep.subr.bf16.mxu0 0
        %495 = vmatpush1.bf16.msra.mxu0 0
        %496 = vmatprep.subr.bf16.mxu0 0
        %497 = vmatpush1.bf16.msra.mxu0 0
        %498 = vmatprep.subr.bf16.mxu0 0
        %499 = vmatpush1.bf16.msra.mxu0 0
        %500 = vmatprep.subr.bf16.mxu0 0
        %501 = vmatpush1.bf16.msra.mxu0 0
        %502 = vmatprep.mubr.bf16.mxu0 0
        %503 = vmatmul.mubr.bf16.gmra.mrb[0].mxu0 %v447
        %v504 = vpop.f32.mrb[0].mxu0
        %v505 = vadd.f32 %v316, %v504
        %v506 = vpop.f32.mrb[0].mxu0
        %v507 = vpop.f32.mrb[0].mxu0
        %v508 = vadd.f32 %v321, %v507
        %v509 = vpop.f32.mrb[0].mxu0
        %510 = vmatprep.mubr.bf16.mxu0 0
        %511 = vmatmul.mubr.bf16.gmra.mrb[0].mxu0 %v450
        %v512 = vpop.f32.mrb[0].mxu0
        %v513 = vadd.f32 %v326, %v512
        %v514 = vpop.f32.mrb[0].mxu0
        %v515 = vpop.f32.mrb[0].mxu0
        %v516 = vadd.f32 %v331, %v515
        %v517 = vpop.f32.mrb[0].mxu0
        %518 = vmatprep.mubr.bf16.mxu0 0
        %519 = vmatmul.mubr.bf16.gmra.mrb[0].mxu0 %v453
        %v520 = vpop.f32.mrb[0].mxu0
        %v521 = vadd.f32 %v336, %v520
        %v522 = vpop.f32.mrb[0].mxu0
        %v523 = vpop.f32.mrb[0].mxu0
        %v524 = vadd.f32 %v341, %v523
        %v525 = vpop.f32.mrb[0].mxu0
        %526 = vmatprep.mubr.bf16.mxu0 0
        %527 = vmatmul.mubr.bf16.gmra.mrb[0].mxu0 %v456
        %v528 = vpop.f32.mrb[0].mxu0
        %v529 = vadd.f32 %v346, %v528
        %v530 = vpop.f32.mrb[0].mxu0
        %v531 = vpop.f32.mrb[0].mxu0
        %v532 = vadd.f32 %v351, %v531
        %v533 = vpop.f32.mrb[0].mxu0
        %534 = vmatprep.mubr.bf16.mxu0 0
        %535 = vmatmul.mubr.bf16.gmra.mrb[0].mxu0 %v459
        %v536 = vpop.f32.mrb[0].mxu0
        %v537 = vadd.f32 %v356, %v536
        %v538 = vpop.f32.mrb[0].mxu0
        %v539 = vpop.f32.mrb[0].mxu0
        %v540 = vadd.f32 %v361, %v539
        %v541 = vpop.f32.mrb[0].mxu0
        %542 = vmatprep.mubr.bf16.mxu0 0
        %543 = vmatmul.mubr.bf16.gmra.mrb[0].mxu0 %v462
        %v544 = vpop.f32.mrb[0].mxu0
        %v545 = vadd.f32 %v366, %v544
        %v546 = vpop.f32.mrb[0].mxu0
        %v547 = vpop.f32.mrb[0].mxu0
        %v548 = vadd.f32 %v371, %v547
        %v549 = vpop.f32.mrb[0].mxu0
        %550 = vmatprep.mubr.bf16.mxu0 0
        %551 = vmatmul.mubr.bf16.gmra.mrb[0].mxu0 %v465
        %v552 = vpop.f32.mrb[0].mxu0
        %v553 = vadd.f32 %v376, %v552
        %v554 = vpop.f32.mrb[0].mxu0
        %v555 = vpop.f32.mrb[0].mxu0
        %v556 = vadd.f32 %v381, %v555
        %v557 = vpop.f32.mrb[0].mxu0
        %558 = vmatprep.mubr.bf16.mxu0 0
        %559 = vmatmul.mubr.bf16.gmra.mrb[0].mxu0 %v468
        %v560 = vpop.f32.mrb[0].mxu0
        %v561 = vadd.f32 %v386, %v560
        %v562 = vpop.f32.mrb[0].mxu0
        %v563 = vpop.f32.mrb[0].mxu0
        %v564 = vadd.f32 %v391, %v563
        %v565 = vpop.f32.mrb[0].mxu0
        %566 = vdwg.mxu0
        %v567 = vmax.f32 %v505, 0.0
        %v568 = vmax.f32 %v508, 0.0
        %v569 = vmax.f32 %v513, 0.0
        %v570 = vmax.f32 %v516, 0.0
        %v571 = vmax.f32 %v521, 0.0
        %v572 = vmax.f32 %v524, 0.0
        %v573 = vmax.f32 %v529, 0.0
        %v574 = vmax.f32 %v532, 0.0
        %v575 = vmax.f32 %v537, 0.0
        %v576 = vmax.f32 %v540, 0.0
        %v577 = vmax.f32 %v545, 0.0
        %v578 = vmax.f32 %v548, 0.0
        %v579 = vmax.f32 %v553, 0.0
        %v580 = vmax.f32 %v556, 0.0
        %v581 = vmax.f32 %v561, 0.0
        %v582 = vmax.f32 %v564, 0.0
        %v583 = vld [vmem:[%s3] sm:$0xff]
        %v584 = vld [vmem:[%s3 + $0x8] sm:$0xff]
        %v585 = vld [vmem:[%s3 + $0x10] sm:$0xff]
        %v586 = vld [vmem:[%s3 + $0x18] sm:$0xff]
        %v587 = vld [vmem:[%s3 + $0x20] sm:$0xff]
        %v588 = vld [vmem:[%s3 + $0x28] sm:$0xff]
        %v589 = vld [vmem:[%s3 + $0x30] sm:$0xff]
        %v590 = vld [vmem:[%s3 + $0x38] sm:$0xff]
        %v591 = vld [vmem:[%s3 + $0x40] sm:$0xff]
        %v592 = vld [vmem:[%s3 + $0x48] sm:$0xff]
        %v593 = vld [vmem:[%s3 + $0x50] sm:$0xff]
        %v594 = vld [vmem:[%s3 + $0x58] sm:$0xff]
        %v595 = vld [vmem:[%s3 + $0x60] sm:$0xff]
        %v596 = vld [vmem:[%s3 + $0x68] sm:$0xff]
        %v597 = vld [vmem:[%s3 + $0x70] sm:$0xff]
        %v598 = vld [vmem:[%s3 + $0x78] sm:$0xff]
        %600 = vset.pattern.permute.xlu0 0
        %601 = vperm.xlu0 %600, %v583
        %v602 = vpop.permute.xlu0 %601
        %605 = vset.pattern.permute.xlu0 0
        %606 = vperm.xlu0 %605, %v584
        %v607 = vpop.permute.xlu0 %606
        %610 = vset.pattern.permute.xlu0 0
        %611 = vperm.xlu0 %610, %v585
        %v612 = vpop.permute.xlu0 %611
        %615 = vset.pattern.permute.xlu0 0
        %616 = vperm.xlu0 %615, %v586
        %v617 = vpop.permute.xlu0 %616
        %620 = vset.pattern.permute.xlu0 0
        %621 = vperm.xlu0 %620, %v587
        %v622 = vpop.permute.xlu0 %621
        %625 = vset.pattern.permute.xlu0 0
        %626 = vperm.xlu0 %625, %v588
        %v627 = vpop.permute.xlu0 %626
        %630 = vset.pattern.permute.xlu0 0
        %631 = vperm.xlu0 %630, %v589
        %v632 = vpop.permute.xlu0 %631
        %635 = vset.pattern.permute.xlu0 0
        %636 = vperm.xlu0 %635, %v590
        %v637 = vpop.permute.xlu0 %636
        %640 = vset.pattern.permute.xlu0 0
        %641 = vperm.xlu0 %640, %v591
        %v642 = vpop.permute.xlu0 %641
        %645 = vset.pattern.permute.xlu0 0
        %646 = vperm.xlu0 %645, %v592
        %v647 = vpop.permute.xlu0 %646
        %650 = vset.pattern.permute.xlu0 0
        %651 = vperm.xlu0 %650, %v593
        %v652 = vpop.permute.xlu0 %651
        %655 = vset.pattern.permute.xlu0 0
        %656 = vperm.xlu0 %655, %v594
        %v657 = vpop.permute.xlu0 %656
        %660 = vset.pattern.permute.xlu0 0
        %661 = vperm.xlu0 %660, %v595
        %v662 = vpop.permute.xlu0 %661
        %665 = vset.pattern.permute.xlu0 0
        %666 = vperm.xlu0 %665, %v596
        %v667 = vpop.permute.xlu0 %666
        %670 = vset.pattern.permute.xlu0 0
        %671 = vperm.xlu0 %670, %v597
        %v672 = vpop.permute.xlu0 %671
        %675 = vset.pattern.permute.xlu0 0
        %676 = vperm.xlu0 %675, %v598
        %v677 = vpop.permute.xlu0 %676
        %v679 = vmul.f32 %v567, %v602
        %v680 = vmul.f32 %v568, %v607
        %v681 = vmul.f32 %v569, %v612
        %v682 = vmul.f32 %v570, %v617
        %v683 = vmul.f32 %v571, %v622
        %v684 = vmul.f32 %v572, %v627
        %v685 = vmul.f32 %v573, %v632
        %v686 = vmul.f32 %v574, %v637
        %v687 = vmul.f32 %v575, %v642
        %v688 = vmul.f32 %v576, %v647
        %v689 = vmul.f32 %v577, %v652
        %v690 = vmul.f32 %v578, %v657
        %v691 = vmul.f32 %v579, %v662
        %v692 = vmul.f32 %v580, %v667
        %v693 = vmul.f32 %v581, %v672
        %v694 = vmul.f32 %v582, %v677
        %v695 = vadd.f32 %v679, %v680
        %v696 = vadd.f32 %v695, %v681
        %v697 = vadd.f32 %v696, %v682
        %v698 = vadd.f32 %v697, %v683
        %v699 = vadd.f32 %v698, %v684
        %v700 = vadd.f32 %v699, %v685
        %v701 = vadd.f32 %v700, %v686
        %v702 = vadd.f32 %v701, %v687
        %v703 = vadd.f32 %v702, %v688
        %v704 = vadd.f32 %v703, %v689
        %v705 = vadd.f32 %v704, %v690
        %v706 = vadd.f32 %v705, %v691
        %v707 = vadd.f32 %v706, %v692
        %v708 = vadd.f32 %v707, %v693
        %v709 = vadd.f32 %v708, %v694
        %v710 = vrot.slane %v709, 4
        %v711 = vadd.f32 %v709, %v710
        %v712 = vrot.slane %v711, 2
        %v713 = vadd.f32 %v711, %v712
        %v714 = vrot.slane %v713, 1
        %v715 = vadd.f32 %v713, %v714
        %s716 = sld [smem:[#allocation2]]
        %v717 = vstv %s716
        %v718 = vadd.f32 %v715, %v717
        %v719 = vxor.u32 %v718, 2147483648
        %v720 = vmul.f32 %v719, 1.442695
        %v721 = vpow.pop %v720
        %v722 = vadd.f32 %v721, 1.0
        %v723 = vrcp.pop %v722
        %v724 = vmul.f32 1.0, %v723
        %725 = vst [vmem:[%s275] sm:$0x1] %v724
        %s726 = sand.u32 %s138, 1
        %s727 = scalar_lea.sflag [#allocation5], %s726
        %s728 = sand.u32 %s138, 1
        %s729 = scalar_lea.vmem [#allocation4], %s728
        // Predicated region
        $region82: #{tpu_custom_call.1} parent=76 // pred_check
          %p730 = pneg %p148
        $region83: #{tpu_custom_call.1} parent=76 // pred_check_branch
          %732 = sbr.rel (%p730) target = $region85
        $region84: #{tpu_custom_call.1} parent=76 // pred_region
          %s734 = ssub.s32 16, 16
          %735 = vsyncadd %s727, %s734
          %s736 = smul.addr %s20, 16
          %s737 = scalar_lea.hbm %s5, %s736
          %s739 = sshll.u32 %s729, 4
          %s740 = int_to_ptr.vmem [resolvable:$true] %s739
          %742 = dma.vmem_to_hbm [thread:$0]  %s740, 16, %s737, %s727
        $region85: #{tpu_custom_call.1} parent=76 // pred_fallthru
          _
      $region77: #{tpu_custom_call.1} parent=5 // pred_fallthru
        _
      %p743 = scmp.le.s32.totalorder 2, %s15
      // Predicated region
      $region86: #{tpu_custom_call.1} parent=5 // pred_check
        %p744 = pneg %p743
      $region87: #{tpu_custom_call.1} parent=5 // pred_check_branch
        %746 = sbr.rel (%p744) target = $region89
      $region88: #{tpu_custom_call.1} parent=5 // pred_region
        %s747 = ssub.s32 %s15, 2
        // Predicated region
        $region90: #{tpu_custom_call.1} parent=88 // pred_check
          %p748 = pneg %p154
        $region91: #{tpu_custom_call.1} parent=88 // pred_check_branch
          %750 = sbr.rel (%p748) target = $region93
        $region92: #{tpu_custom_call.1} parent=88 // pred_region
          %s751 = sand.u32 %s139, 1
          %s752 = scalar_lea.sflag [#allocation5], %s751
          %s753 = sand.u32 %s139, 1
          %s754 = scalar_lea.vmem [#allocation4], %s753
          %755 = dma.done %s752, 16
        $region93: #{tpu_custom_call.1} parent=88 // pred_fallthru
          _
      $region89: #{tpu_custom_call.1} parent=5 // pred_fallthru
        _
    $region6: #{tpu_custom_call.1} parent=1 // loop_footer
      %s19 = sadd.s32 1, %s15
    $region7: #{tpu_custom_call.1} parent=1 // loop_footer_branch
      %14 = sbr.rel target = $region3
    $region8: #{tpu_custom_call.1} parent=1 // loop_exit
      _
    %756 = vsyncpa [#allocation5], 1
    %s757 = scalar_lea.sflag [#allocation5], 1
    %758 = vsyncpa %s757, 1

</llo_original>
